<compile_context>
chip_gen: v7x
topology: tpu7x:2x2x1
jax: 0.10.0
libtpu: 0.0.40
codegen_flags: <defaults>
</compile_context>

<pallas_src>
import math
import jax
import jax.numpy as jnp
from jax.experimental import pallas as pl
from jax.experimental.pallas import tpu as pltpu

IN_DIM = 512
H1 = 256
H2 = 256
OUT_DIM = 2
OUT_ROWS = 8  # sublane-padded output rows (rows 0-1 real, 2-7 zero)


def _mlp_kernel(x_ref, w1_ref, b1_ref, w2_ref, b2_ref, w3_ref, b3_ref, o_ref):
    # Cast activations to bf16 (MXU-native); no-op if x already bf16.
    x = x_ref[...].astype(jnp.bfloat16)

    # fc1 + ReLU (f32 accumulate / f32 epilogue, re-cast for next bf16 matmul)
    h1 = jnp.dot(x, w1_ref[...], preferred_element_type=jnp.float32)
    h1 = jnp.maximum(h1 + b1_ref[...], 0.0).astype(jnp.bfloat16)

    # fc2 + ReLU
    h2 = jnp.dot(h1, w2_ref[...], preferred_element_type=jnp.float32)
    h2 = jnp.maximum(h2 + b2_ref[...], 0.0).astype(jnp.bfloat16)

    # fc3, transposed: (8, 256) . (TM, 256)^T -> (8, TM)   (NT pattern, MXU-friendly)
    o_t = jax.lax.dot_general(
        w3_ref[...], h2,
        dimension_numbers=(((1,), (1,)), ((), ())),
        preferred_element_type=jnp.float32,
    ) + b3_ref[...]
    o_ref[...] = o_t.astype(o_ref.dtype)


def init_params(key):
    """nn.Linear default init: U(-1/sqrt(fan_in), +1/sqrt(fan_in)).
    Weights stored as (in_features, out_features) float32."""
    def linear(k, fan_in, fan_out):
        kw, kb = jax.random.split(k)
        bound = 1.0 / math.sqrt(fan_in)
        w = jax.random.uniform(kw, (fan_in, fan_out), jnp.float32, -bound, bound)
        b = jax.random.uniform(kb, (fan_out,), jnp.float32, -bound, bound)
        return w, b

    k1, k2, k3 = jax.random.split(key, 3)
    w1, b1 = linear(k1, IN_DIM, H1)
    w2, b2 = linear(k2, H1, H2)
    w3, b3 = linear(k3, H2, OUT_DIM)
    return (w1, b1, w2, b2, w3, b3)


def prepare_params(params):
    """One-time conversion to kernel-ready layout:
    bf16 fc1/fc2 in (in, out) layout, fc3 transposed+row-padded to (8, 256),
    biases f32 ((1, H) for fc1/fc2, (8, 1) for fc3)."""
    w1, b1, w2, b2, w3, b3 = params
    w1k = w1.astype(jnp.bfloat16)                               # (512, 256)
    w2k = w2.astype(jnp.bfloat16)                               # (256, 256)
    w3k = (jnp.zeros((OUT_ROWS, H2), jnp.float32)
           .at[:OUT_DIM, :].set(w3.T)).astype(jnp.bfloat16)     # (8, 256)
    b1k = b1.reshape(1, H1).astype(jnp.float32)
    b2k = b2.reshape(1, H2).astype(jnp.float32)
    b3k = jnp.zeros((OUT_ROWS, 1), jnp.float32).at[:OUT_DIM, 0].set(b3)
    return (w1k, b1k, w2k, b2k, w3k, b3k)


def _round_up(n, m):
    return ((n + m - 1) // m) * m


def _pick_tile(B):
    """Batch tile. Large B -> big tiles (DMA/grid-overhead amortization, fills
    the 256-row MXU on v6e/v7x) while keeping >=2 grid steps for megacore."""
    if B <= 128:
        return _round_up(max(B, 1), 8)   # single block
    if B >= 1024:
        return 512
    if B >= 512:
        return 256
    return 128


def action_generator_forward(x, kernel_params):
    """x: (B, 512) float32 or bfloat16. kernel_params: output of prepare_params.
    Returns (B, 2) float32."""
    w1k, b1k, w2k, b2k, w3k, b3k = kernel_params
    B = x.shape[0]

    TM = _pick_tile(B)
    grid_m = pl.cdiv(B, TM)
    B_pad = grid_m * TM   # only the tiny (8, B_pad) output is padded; x is NOT padded

    x_bytes = B * IN_DIM * x.dtype.itemsize
    weight_bytes = ((w1k.size + w2k.size + w3k.size) * 2
                    + (b1k.size + b2k.size + b3k.size) * 4)
    cost = pl.CostEstimate(
        flops=2 * B_pad * (IN_DIM * H1 + H1 * H2 + H2 * OUT_ROWS),
        transcendentals=0,
        bytes_accessed=weight_bytes + x_bytes + OUT_ROWS * B_pad * 4,
    )

    out_t = pl.pallas_call(
        _mlp_kernel,
        out_shape=jax.ShapeDtypeStruct((OUT_ROWS, B_pad), jnp.float32),
        grid=(grid_m,),
        in_specs=[
            pl.BlockSpec((TM, IN_DIM), lambda i: (i, 0)),        # x: tiled over batch
            pl.BlockSpec((IN_DIM, H1), lambda i: (0, 0)),        # weights/biases resident
            pl.BlockSpec((1, H1), lambda i: (0, 0)),
            pl.BlockSpec((H1, H2), lambda i: (0, 0)),
            pl.BlockSpec((1, H2), lambda i: (0, 0)),
            pl.BlockSpec((OUT_ROWS, H2), lambda i: (0, 0)),
            pl.BlockSpec((OUT_ROWS, 1), lambda i: (0, 0)),
        ],
        out_specs=pl.BlockSpec((OUT_ROWS, TM), lambda i: (0, i)),  # lane-dense (8, TM) slab
        compiler_params=pltpu.CompilerParams(
            dimension_semantics=("parallel",),   # megacore-friendly on v7x
            vmem_limit_bytes=32 << 20,           # ~5 MiB needed at TM=512; ample headroom
        ),
        cost_estimate=cost,
    )(x, w1k, b1k, w2k, b2k, w3k, b3k)

    # Tiny slice (2 x B f32) + transpose back to row-major (B, 2).
    return out_t[:OUT_DIM, :B].T


def reference_forward_bf16(x, kernel_params):
    """Pure-JAX reference using the same bf16 kernel params (f32 accumulate)."""
    w1k, b1k, w2k, b2k, w3k, b3k = kernel_params
    xb = x.astype(jnp.bfloat16)
    h1 = jnp.maximum(
        jnp.dot(xb, w1k, preferred_element_type=jnp.float32) + b1k, 0.0
    ).astype(jnp.bfloat16)
    h2 = jnp.maximum(
        jnp.dot(h1, w2k, preferred_element_type=jnp.float32) + b2k, 0.0
    ).astype(jnp.bfloat16)
    o_t = jax.lax.dot_general(
        w3k, h2, (((1,), (1,)), ((), ())), preferred_element_type=jnp.float32
    ) + b3k
    return o_t[:OUT_DIM, :].T


def reference_forward_f32(x, params):
    w1, b1, w2, b2, w3, b3 = params
    h1 = jnp.maximum(x @ w1 + b1, 0.0)
    h2 = jnp.maximum(h1 @ w2 + b2, 0.0)
    return h2 @ w3 + b3


if __name__ == "__main__":
    key = jax.random.PRNGKey(0)
    kx, kp = jax.random.split(key)

    params = init_params(kp)
    kernel_params = prepare_params(params)   # one-time prep (bf16 + transposed fc3)

    # 1) Small-batch path (single block).
    B = 8
    x = jax.random.normal(kx, (B, IN_DIM), jnp.float32)
    out = jax.block_until_ready(action_generator_forward(x, kernel_params))
    assert out.shape == (B, OUT_DIM), out.shape
    ref_bf16 = reference_forward_bf16(x, kernel_params)
    assert jnp.allclose(out, ref_bf16, atol=1e-3, rtol=1e-3), "mismatch vs bf16 reference"
    ref_f32 = reference_forward_f32(x, params)
    assert jnp.allclose(out, ref_f32, atol=5e-2, rtol=5e-2), "drifted too far from f32 reference"

    # 2) Ragged multi-tile path (2 grid steps, last block partial, no wrapper pad).
    B2 = 200
    x2 = jax.random.normal(kx, (B2, IN_DIM), jnp.float32)
    out2 = jax.block_until_ready(action_generator_forward(x2, kernel_params))
    assert out2.shape == (B2, OUT_DIM), out2.shape
    ref2 = reference_forward_bf16(x2, kernel_params)
    assert jnp.allclose(out2, ref2, atol=1e-3, rtol=1e-3), "mismatch on ragged multi-tile path"

    print("KERNEL_OK")
</pallas_src>

<mosaic_0001>
module attributes {stable_mosaic.version = 11 : i64} {
  func.func @_mlp_kernel(%arg0: i32, %arg1: memref<8x512xf32, #tpu.memory_space<vmem>>, %arg2: memref<512x256xbf16, #tpu.memory_space<vmem>>, %arg3: memref<1x256xf32, #tpu.memory_space<vmem>>, %arg4: memref<256x256xbf16, #tpu.memory_space<vmem>>, %arg5: memref<1x256xf32, #tpu.memory_space<vmem>>, %arg6: memref<8x256xbf16, #tpu.memory_space<vmem>>, %arg7: memref<8x1xf32, #tpu.memory_space<vmem>>, %arg8: memref<8x8xf32, #tpu.memory_space<vmem>>) attributes {dimension_semantics = [#tpu.dimension_semantics<parallel>], iteration_bounds = array<i64: 1>, scalar_prefetch = 0 : i64, scratch_operands = 0 : i64, tpu.core_type = #tpu.core_type<tc>, window_params = [{transform_indices = @transform_0, window_bounds = array<i64: 8, 512>}, {pipeline_mode = #tpu.pipeline_mode<synchronous>, transform_indices = @transform_1, window_bounds = array<i64: 512, 256>}, {pipeline_mode = #tpu.pipeline_mode<synchronous>, transform_indices = @transform_2, window_bounds = array<i64: 1, 256>}, {pipeline_mode = #tpu.pipeline_mode<synchronous>, transform_indices = @transform_3, window_bounds = array<i64: 256, 256>}, {pipeline_mode = #tpu.pipeline_mode<synchronous>, transform_indices = @transform_4, window_bounds = array<i64: 1, 256>}, {pipeline_mode = #tpu.pipeline_mode<synchronous>, transform_indices = @transform_5, window_bounds = array<i64: 8, 256>}, {pipeline_mode = #tpu.pipeline_mode<synchronous>, transform_indices = @transform_6, window_bounds = array<i64: 8, 1>}, {transform_indices = @transform_7, window_bounds = array<i64: 8, 8>}]} {
    %c0 = arith.constant 0 : index
    %c0_0 = arith.constant 0 : index
    %0 = vector.load %arg1[%c0, %c0_0] : memref<8x512xf32, #tpu.memory_space<vmem>>, vector<8x512xf32>
    %1 = arith.truncf %0 : vector<8x512xf32> to vector<8x512xbf16>
    %c0_1 = arith.constant 0 : index
    %c0_2 = arith.constant 0 : index
    %2 = vector.load %arg2[%c0_1, %c0_2] : memref<512x256xbf16, #tpu.memory_space<vmem>>, vector<512x256xbf16>
    %cst = arith.constant dense<0.000000e+00> : vector<8x256xf32>
    %3 = tpu.matmul %1, %2, %cst {dimension_numbers = #tpu.dot_dimension_numbers<[1], [0], [0], [1], [0, 0, 1, 1], [], []>} : vector<8x512xbf16>, vector<512x256xbf16>, vector<8x256xf32> -> vector<8x256xf32>
    %c0_3 = arith.constant 0 : index
    %c0_4 = arith.constant 0 : index
    %4 = vector.load %arg3[%c0_3, %c0_4] : memref<1x256xf32, #tpu.memory_space<vmem>>, vector<1x256xf32>
    %5 = vector.broadcast %4 : vector<1x256xf32> to vector<8x256xf32>
    %6 = arith.addf %3, %5 : vector<8x256xf32>
    %cst_5 = arith.constant 0.000000e+00 : f32
    %7 = vector.broadcast %cst_5 : f32 to vector<8x256xf32>
    %8 = arith.maximumf %6, %7 : vector<8x256xf32>
    %9 = arith.truncf %8 : vector<8x256xf32> to vector<8x256xbf16>
    %c0_6 = arith.constant 0 : index
    %c0_7 = arith.constant 0 : index
    %10 = vector.load %arg4[%c0_6, %c0_7] : memref<256x256xbf16, #tpu.memory_space<vmem>>, vector<256x256xbf16>
    %cst_8 = arith.constant dense<0.000000e+00> : vector<8x256xf32>
    %11 = tpu.matmul %9, %10, %cst_8 {dimension_numbers = #tpu.dot_dimension_numbers<[1], [0], [0], [1], [0, 0, 1, 1], [], []>} : vector<8x256xbf16>, vector<256x256xbf16>, vector<8x256xf32> -> vector<8x256xf32>
    %c0_9 = arith.constant 0 : index
    %c0_10 = arith.constant 0 : index
    %12 = vector.load %arg5[%c0_9, %c0_10] : memref<1x256xf32, #tpu.memory_space<vmem>>, vector<1x256xf32>
    %13 = vector.broadcast %12 : vector<1x256xf32> to vector<8x256xf32>
    %14 = arith.addf %11, %13 : vector<8x256xf32>
    %cst_11 = arith.constant 0.000000e+00 : f32
    %15 = vector.broadcast %cst_11 : f32 to vector<8x256xf32>
    %16 = arith.maximumf %14, %15 : vector<8x256xf32>
    %17 = arith.truncf %16 : vector<8x256xf32> to vector<8x256xbf16>
    %c0_12 = arith.constant 0 : index
    %c0_13 = arith.constant 0 : index
    %18 = vector.load %arg6[%c0_12, %c0_13] : memref<8x256xbf16, #tpu.memory_space<vmem>>, vector<8x256xbf16>
    %cst_14 = arith.constant dense<0.000000e+00> : vector<8x8xf32>
    %19 = tpu.matmul %18, %17, %cst_14 {dimension_numbers = #tpu.dot_dimension_numbers<[1], [1], [0], [0], [0, 0, 1, 0], [], []>} : vector<8x256xbf16>, vector<8x256xbf16>, vector<8x8xf32> -> vector<8x8xf32>
    %c0_15 = arith.constant 0 : index
    %c0_16 = arith.constant 0 : index
    %20 = vector.load %arg7[%c0_15, %c0_16] : memref<8x1xf32, #tpu.memory_space<vmem>>, vector<8x1xf32>
    %21 = vector.broadcast %20 : vector<8x1xf32> to vector<8x8xf32>
    %22 = arith.addf %19, %21 : vector<8x8xf32>
    %c0_17 = arith.constant 0 : index
    %c0_18 = arith.constant 0 : index
    %23 = vector.load %arg8[%c0_17, %c0_18] : memref<8x8xf32, #tpu.memory_space<vmem>>, vector<8x8xf32>
    tpu.vector_store %arg8[%c0_17, %c0_18], %22 {strides = array<i32>} : memref<8x8xf32, #tpu.memory_space<vmem>>, vector<8x8xf32>,
    return
  }
  func.func @transform_0(%arg0: i32) -> (i32, i32) {
    %c0_i32 = arith.constant 0 : i32
    %c0_i32_0 = arith.constant 0 : i32
    return %arg0, %c0_i32 : i32, i32
  }
  func.func @transform_1(%arg0: i32) -> (i32, i32) {
    %c0_i32 = arith.constant 0 : i32
    %c0_i32_0 = arith.constant 0 : i32
    %c0_i32_1 = arith.constant 0 : i32
    return %c0_i32, %c0_i32_0 : i32, i32
  }
  func.func @transform_2(%arg0: i32) -> (i32, i32) {
    %c0_i32 = arith.constant 0 : i32
    %c0_i32_0 = arith.constant 0 : i32
    %c0_i32_1 = arith.constant 0 : i32
    return %c0_i32, %c0_i32_0 : i32, i32
  }
  func.func @transform_3(%arg0: i32) -> (i32, i32) {
    %c0_i32 = arith.constant 0 : i32
    %c0_i32_0 = arith.constant 0 : i32
    %c0_i32_1 = arith.constant 0 : i32
    return %c0_i32, %c0_i32_0 : i32, i32
  }
  func.func @transform_4(%arg0: i32) -> (i32, i32) {
    %c0_i32 = arith.constant 0 : i32
    %c0_i32_0 = arith.constant 0 : i32
    %c0_i32_1 = arith.constant 0 : i32
    return %c0_i32, %c0_i32_0 : i32, i32
  }
  func.func @transform_5(%arg0: i32) -> (i32, i32) {
    %c0_i32 = arith.constant 0 : i32
    %c0_i32_0 = arith.constant 0 : i32
    %c0_i32_1 = arith.constant 0 : i32
    return %c0_i32, %c0_i32_0 : i32, i32
  }
  func.func @transform_6(%arg0: i32) -> (i32, i32) {
    %c0_i32 = arith.constant 0 : i32
    %c0_i32_0 = arith.constant 0 : i32
    %c0_i32_1 = arith.constant 0 : i32
    return %c0_i32, %c0_i32_0 : i32, i32
  }
  func.func @transform_7(%arg0: i32) -> (i32, i32) {
    %c0_i32 = arith.constant 0 : i32
    %c0_i32_0 = arith.constant 0 : i32
    return %c0_i32, %arg0 : i32, i32
  }
}

</mosaic_0001>

<llo_original>
// kernel: tpu_custom_call.1
$region0: #{tpu_custom_call.1}
  #allocation0 [shape = 'u32[]', space=smem, size = 0x4, offset = 0x4, fixed_abs, tag = 'smem constant byte address 0x4 - core index']
  #allocation1 [shape = 'u32[144,128]{1,0:T(1,128)}', space=vmem, size = 0x12000, scoped, tag = 'internal scratch']
  %s0 = inlined_call_operand.hbm [shape: f32[8,512], index: 0, kind: input, shape index: {}]
  %s1 = inlined_call_operand.hbm [shape: bf16[512,256], index: 1, kind: input, shape index: {}]
  %s2 = inlined_call_operand.vmem [shape: f32[1,256], index: 2, kind: input, shape index: {}]
  %s3 = inlined_call_operand.hbm [shape: bf16[256,256], index: 3, kind: input, shape index: {}]
  %s4 = inlined_call_operand.vmem [shape: f32[1,256], index: 4, kind: input, shape index: {}]
  %s5 = inlined_call_operand.vmem [shape: bf16[8,256], index: 5, kind: input, shape index: {}]
  %s6 = inlined_call_operand.vmem [shape: f32[8,1], index: 6, kind: input, shape index: {}]
  %s7 = inlined_call_operand.hbm [shape: f32[8,8], index: 7, kind: output, shape index: {}]
  %s8 = sld [smem:[#allocation0]]
  $region50: #{tpu_custom_call.1} parent=0
    _
  %s10 = ssub.s32 1, %s8
  %s11 = scalar_select 0, %s10, %s8
  $region1: #{tpu_custom_call.1} parent=0
    #allocation2 [shape = 'u8[16384]{0}', space=vmem, size = 0x4000, scoped, tag = 'input window, operand 0, single buffered']
    #allocation3 [shape = 's32[1]{0}', space=sflag, size = 0x4, scoped, tag = 'scoped memory for tpu_custom_call.1']
    #allocation4 [shape = 's32[1]{0}', space=sflag, size = 0x4, scoped, tag = 'scoped memory for tpu_custom_call.1']
    #allocation5 [shape = 'u8[262144]{0}', space=vmem, size = 0x40000, scoped, tag = 'input window, operand 1, single buffered']
    #allocation6 [shape = 's32[1]{0}', space=sflag, size = 0x4, scoped, tag = 'scoped memory for tpu_custom_call.1']
    #allocation7 [shape = 'u8[131072]{0}', space=vmem, size = 0x20000, scoped, tag = 'input window, operand 3, single buffered']
    #allocation8 [shape = 'u8[4096]{0}', space=vmem, size = 0x1000, scoped, tag = 'output window, operand 0, single buffered']
    %12 = vsyncpa [#allocation3], 0
    %13 = vsyncpa [#allocation6], 0
    %14 = vsyncpa [#allocation4], 0
    // Predicated region
    $region2: #{tpu_custom_call.1} parent=1 // pred_check
      _
    $region3: #{tpu_custom_call.1} parent=1 // pred_check_branch
      %16 = sbr.rel (0) target = $region5
    $region4: #{tpu_custom_call.1} parent=1 // pred_region
      %s18 = ssub.s32 512, 512
      %19 = vsyncadd [#allocation3], %s18
      %s21 = sshll.u32 [#allocation2], 4
      %s22 = int_to_ptr.vmem [resolvable:$true] %s21
      %24 = dma.hbm_to_vmem [thread:$0]  %s0, 512, %s22, [#allocation3]
    $region5: #{tpu_custom_call.1} parent=1 // pred_fallthru
      _
    // Predicated region
    $region6: #{tpu_custom_call.1} parent=1 // pred_check
      _
    $region7: #{tpu_custom_call.1} parent=1 // pred_check_branch
      %26 = sbr.rel (0) target = $region9
    $region8: #{tpu_custom_call.1} parent=1 // pred_region
      %s28 = ssub.s32 8192, 8192
      %29 = vsyncadd [#allocation6], %s28
      %s30 = sshll.u32 [#allocation5], 4
      %s31 = int_to_ptr.vmem [resolvable:$true] %s30
      %36 = dma.hbm_to_vmem [thread:$0]  %s1, 8192, %s31, [#allocation6], 128, 128, 8
    $region9: #{tpu_custom_call.1} parent=1 // pred_fallthru
      _
    // Predicated region
    $region10: #{tpu_custom_call.1} parent=1 // pred_check
      _
    $region11: #{tpu_custom_call.1} parent=1 // pred_check_branch
      %38 = sbr.rel (0) target = $region13
    $region12: #{tpu_custom_call.1} parent=1 // pred_region
      _
    $region13: #{tpu_custom_call.1} parent=1 // pred_fallthru
      _
    // Predicated region
    $region14: #{tpu_custom_call.1} parent=1 // pred_check
      _
    $region15: #{tpu_custom_call.1} parent=1 // pred_check_branch
      %40 = sbr.rel (0) target = $region17
    $region16: #{tpu_custom_call.1} parent=1 // pred_region
      %s42 = ssub.s32 4096, 4096
      %43 = vsyncadd [#allocation6], %s42
      %s44 = sshll.u32 [#allocation7], 4
      %s45 = int_to_ptr.vmem [resolvable:$true] %s44
      %50 = dma.hbm_to_vmem [thread:$0]  %s3, 4096, %s45, [#allocation6], 128, 128, 8
    $region17: #{tpu_custom_call.1} parent=1 // pred_fallthru
      _
    // Predicated region
    $region18: #{tpu_custom_call.1} parent=1 // pred_check
      _
    $region19: #{tpu_custom_call.1} parent=1 // pred_check_branch
      %52 = sbr.rel (0) target = $region21
    $region20: #{tpu_custom_call.1} parent=1 // pred_region
      _
    $region21: #{tpu_custom_call.1} parent=1 // pred_fallthru
      _
    // Predicated region
    $region22: #{tpu_custom_call.1} parent=1 // pred_check
      _
    $region23: #{tpu_custom_call.1} parent=1 // pred_check_branch
      %54 = sbr.rel (0) target = $region25
    $region24: #{tpu_custom_call.1} parent=1 // pred_region
      _
    $region25: #{tpu_custom_call.1} parent=1 // pred_fallthru
      _
    // Predicated region
    $region26: #{tpu_custom_call.1} parent=1 // pred_check
      _
    $region27: #{tpu_custom_call.1} parent=1 // pred_check_branch
      %56 = sbr.rel (0) target = $region29
    $region28: #{tpu_custom_call.1} parent=1 // pred_region
      _
    $region29: #{tpu_custom_call.1} parent=1 // pred_fallthru
      _
    // Predicated region
    $region30: #{tpu_custom_call.1} parent=1 // pred_check
      _
    $region31: #{tpu_custom_call.1} parent=1 // pred_check_branch
      %58 = sbr.rel (0) target = $region33
    $region32: #{tpu_custom_call.1} parent=1 // pred_region
      %59 = dma.done [#allocation3], 512
    $region33: #{tpu_custom_call.1} parent=1 // pred_fallthru
      _
    // Predicated region
    $region34: #{tpu_custom_call.1} parent=1 // pred_check
      _
    $region35: #{tpu_custom_call.1} parent=1 // pred_check_branch
      %61 = sbr.rel (0) target = $region37
    $region36: #{tpu_custom_call.1} parent=1 // pred_region
      %62 = dma.done [#allocation6], 8192
    $region37: #{tpu_custom_call.1} parent=1 // pred_fallthru
      _
    // Predicated region
    $region38: #{tpu_custom_call.1} parent=1 // pred_check
      _
    $region39: #{tpu_custom_call.1} parent=1 // pred_check_branch
      %64 = sbr.rel (0) target = $region41
    $region40: #{tpu_custom_call.1} parent=1 // pred_region
      %65 = dma.done [#allocation6], 4096
    $region41: #{tpu_custom_call.1} parent=1 // pred_fallthru
      _
    %v67 = vld [vmem:[#allocation2] sm:$0xff]
    %v68 = vld [vmem:[#allocation2 + $0x8] sm:$0xff]
    %v69 = vld [vmem:[#allocation2 + $0x10] sm:$0xff]
    %v70 = vld [vmem:[#allocation2 + $0x18] sm:$0xff]
    %v71 = vpack.c.bf16 %v67, %v67
    %v72 = vpack.c.bf16 %v68, %v68
    %v73 = vpack.c.bf16 %v69, %v69
    %v74 = vpack.c.bf16 %v70, %v70
    %v75 = vld [vmem:[#allocation5] sm:$0xff]
    %v76 = vld [vmem:[#allocation5 + $0x8] sm:$0xff]
    %v77 = vld [vmem:[#allocation5 + $0x10] sm:$0xff]
    %v78 = vld [vmem:[#allocation5 + $0x18] sm:$0xff]
    %v79 = vld [vmem:[#allocation5 + $0x20] sm:$0xff]
    %v80 = vld [vmem:[#allocation5 + $0x28] sm:$0xff]
    %v81 = vld [vmem:[#allocation5 + $0x30] sm:$0xff]
    %v82 = vld [vmem:[#allocation5 + $0x38] sm:$0xff]
    %v83 = vld [vmem:[#allocation5 + $0x40] sm:$0xff]
    %v84 = vld [vmem:[#allocation5 + $0x48] sm:$0xff]
    %v85 = vld [vmem:[#allocation5 + $0x50] sm:$0xff]
    %v86 = vld [vmem:[#allocation5 + $0x58] sm:$0xff]
    %v87 = vld [vmem:[#allocation5 + $0x60] sm:$0xff]
    %v88 = vld [vmem:[#allocation5 + $0x68] sm:$0xff]
    %v89 = vld [vmem:[#allocation5 + $0x70] sm:$0xff]
    %v90 = vld [vmem:[#allocation5 + $0x78] sm:$0xff]
    %v91 = vld [vmem:[#allocation5 + $0x80] sm:$0xff]
    %v92 = vld [vmem:[#allocation5 + $0x88] sm:$0xff]
    %v93 = vld [vmem:[#allocation5 + $0x90] sm:$0xff]
    %v94 = vld [vmem:[#allocation5 + $0x98] sm:$0xff]
    %v95 = vld [vmem:[#allocation5 + $0xa0] sm:$0xff]
    %v96 = vld [vmem:[#allocation5 + $0xa8] sm:$0xff]
    %v97 = vld [vmem:[#allocation5 + $0xb0] sm:$0xff]
    %v98 = vld [vmem:[#allocation5 + $0xb8] sm:$0xff]
    %v99 = vld [vmem:[#allocation5 + $0xc0] sm:$0xff]
    %v100 = vld [vmem:[#allocation5 + $0xc8] sm:$0xff]
    %v101 = vld [vmem:[#allocation5 + $0xd0] sm:$0xff]
    %v102 = vld [vmem:[#allocation5 + $0xd8] sm:$0xff]
    %v103 = vld [vmem:[#allocation5 + $0xe0] sm:$0xff]
    %v104 = vld [vmem:[#allocation5 + $0xe8] sm:$0xff]
    %v105 = vld [vmem:[#allocation5 + $0xf0] sm:$0xff]
    %v106 = vld [vmem:[#allocation5 + $0xf8] sm:$0xff]
    %v107 = vld [vmem:[#allocation5 + $0x100] sm:$0xff]
    %v108 = vld [vmem:[#allocation5 + $0x108] sm:$0xff]
    %v109 = vld [vmem:[#allocation5 + $0x110] sm:$0xff]
    %v110 = vld [vmem:[#allocation5 + $0x118] sm:$0xff]
    %v111 = vld [vmem:[#allocation5 + $0x120] sm:$0xff]
    %v112 = vld [vmem:[#allocation5 + $0x128] sm:$0xff]
    %v113 = vld [vmem:[#allocation5 + $0x130] sm:$0xff]
    %v114 = vld [vmem:[#allocation5 + $0x138] sm:$0xff]
    %v115 = vld [vmem:[#allocation5 + $0x140] sm:$0xff]
    %v116 = vld [vmem:[#allocation5 + $0x148] sm:$0xff]
    %v117 = vld [vmem:[#allocation5 + $0x150] sm:$0xff]
    %v118 = vld [vmem:[#allocation5 + $0x158] sm:$0xff]
    %v119 = vld [vmem:[#allocation5 + $0x160] sm:$0xff]
    %v120 = vld [vmem:[#allocation5 + $0x168] sm:$0xff]
    %v121 = vld [vmem:[#allocation5 + $0x170] sm:$0xff]
    %v122 = vld [vmem:[#allocation5 + $0x178] sm:$0xff]
    %v123 = vld [vmem:[#allocation5 + $0x180] sm:$0xff]
    %v124 = vld [vmem:[#allocation5 + $0x188] sm:$0xff]
    %v125 = vld [vmem:[#allocation5 + $0x190] sm:$0xff]
    %v126 = vld [vmem:[#allocation5 + $0x198] sm:$0xff]
    %v127 = vld [vmem:[#allocation5 + $0x1a0] sm:$0xff]
    %v128 = vld [vmem:[#allocation5 + $0x1a8] sm:$0xff]
    %v129 = vld [vmem:[#allocation5 + $0x1b0] sm:$0xff]
    %v130 = vld [vmem:[#allocation5 + $0x1b8] sm:$0xff]
    %v131 = vld [vmem:[#allocation5 + $0x1c0] sm:$0xff]
    %v132 = vld [vmem:[#allocation5 + $0x1c8] sm:$0xff]
    %v133 = vld [vmem:[#allocation5 + $0x1d0] sm:$0xff]
    %v134 = vld [vmem:[#allocation5 + $0x1d8] sm:$0xff]
    %v135 = vld [vmem:[#allocation5 + $0x1e0] sm:$0xff]
    %v136 = vld [vmem:[#allocation5 + $0x1e8] sm:$0xff]
    %v137 = vld [vmem:[#allocation5 + $0x1f0] sm:$0xff]
    %v138 = vld [vmem:[#allocation5 + $0x1f8] sm:$0xff]
    %v139 = vld [vmem:[%s2] sm:$0x3]
    %v141 = vlaneseq
    %v142 = vshrl.u32 %v141, 7
    %v143 = vsub.s32 0, %v142
    %v144 = vrot.slane %v139, %v143
    %v145 = vlaneseq
    %v146 = vshrl.u32 %v145, 7
    %v147 = vsub.s32 1, %v146
    %v148 = vrot.slane %v139, %v147
    %v215 = vunpack.c.l.b16 %v75
    %v216 = vunpack.c.h.b16 %v75
    %v217 = vunpack.c.l.b16 %v76
    %v218 = vunpack.c.h.b16 %v76
    %v219 = vunpack.c.l.b16 %v77
    %v220 = vunpack.c.h.b16 %v77
    %v221 = vunpack.c.l.b16 %v78
    %v222 = vunpack.c.h.b16 %v78
    %v223 = vunpack.c.l.b16 %v79
    %v224 = vunpack.c.h.b16 %v79
    %v225 = vunpack.c.l.b16 %v80
    %v226 = vunpack.c.h.b16 %v80
    %v227 = vunpack.c.l.b16 %v81
    %v228 = vunpack.c.h.b16 %v81
    %v229 = vunpack.c.l.b16 %v82
    %v230 = vunpack.c.h.b16 %v82
    %v231 = vunpack.c.l.b16 %v83
    %v232 = vunpack.c.h.b16 %v83
    %v233 = vunpack.c.l.b16 %v84
    %v234 = vunpack.c.h.b16 %v84
    %v235 = vunpack.c.l.b16 %v85
    %v236 = vunpack.c.h.b16 %v85
    %v237 = vunpack.c.l.b16 %v86
    %v238 = vunpack.c.h.b16 %v86
    %v239 = vunpack.c.l.b16 %v87
    %v240 = vunpack.c.h.b16 %v87
    %v241 = vunpack.c.l.b16 %v88
    %v242 = vunpack.c.h.b16 %v88
    %v243 = vunpack.c.l.b16 %v89
    %v244 = vunpack.c.h.b16 %v89
    %v245 = vunpack.c.l.b16 %v90
    %v246 = vunpack.c.h.b16 %v90
    %v247 = vunpack.c.l.b16 %v91
    %v248 = vunpack.c.h.b16 %v91
    %v249 = vunpack.c.l.b16 %v92
    %v250 = vunpack.c.h.b16 %v92
    %v251 = vunpack.c.l.b16 %v93
    %v252 = vunpack.c.h.b16 %v93
    %v253 = vunpack.c.l.b16 %v94
    %v254 = vunpack.c.h.b16 %v94
    %v255 = vunpack.c.l.b16 %v95
    %v256 = vunpack.c.h.b16 %v95
    %v257 = vunpack.c.l.b16 %v96
    %v258 = vunpack.c.h.b16 %v96
    %v259 = vunpack.c.l.b16 %v97
    %v260 = vunpack.c.h.b16 %v97
    %v261 = vunpack.c.l.b16 %v98
    %v262 = vunpack.c.h.b16 %v98
    %v263 = vunpack.c.l.b16 %v99
    %v264 = vunpack.c.h.b16 %v99
    %v265 = vunpack.c.l.b16 %v100
    %v266 = vunpack.c.h.b16 %v100
    %v267 = vunpack.c.l.b16 %v101
    %v268 = vunpack.c.h.b16 %v101
    %v269 = vunpack.c.l.b16 %v102
    %v270 = vunpack.c.h.b16 %v102
    %v271 = vunpack.c.l.b16 %v103
    %v272 = vunpack.c.h.b16 %v103
    %v273 = vunpack.c.l.b16 %v104
    %v274 = vunpack.c.h.b16 %v104
    %v275 = vunpack.c.l.b16 %v105
    %v276 = vunpack.c.h.b16 %v105
    %v277 = vunpack.c.l.b16 %v106
    %v278 = vunpack.c.h.b16 %v106
    %v279 = vunpack.c.l.b16 %v107
    %v280 = vunpack.c.h.b16 %v107
    %v281 = vunpack.c.l.b16 %v108
    %v282 = vunpack.c.h.b16 %v108
    %v283 = vunpack.c.l.b16 %v109
    %v284 = vunpack.c.h.b16 %v109
    %v285 = vunpack.c.l.b16 %v110
    %v286 = vunpack.c.h.b16 %v110
    %v287 = vunpack.c.l.b16 %v111
    %v288 = vunpack.c.h.b16 %v111
    %v289 = vunpack.c.l.b16 %v112
    %v290 = vunpack.c.h.b16 %v112
    %v291 = vunpack.c.l.b16 %v113
    %v292 = vunpack.c.h.b16 %v113
    %v293 = vunpack.c.l.b16 %v114
    %v294 = vunpack.c.h.b16 %v114
    %v295 = vunpack.c.l.b16 %v115
    %v296 = vunpack.c.h.b16 %v115
    %v297 = vunpack.c.l.b16 %v116
    %v298 = vunpack.c.h.b16 %v116
    %v299 = vunpack.c.l.b16 %v117
    %v300 = vunpack.c.h.b16 %v117
    %v301 = vunpack.c.l.b16 %v118
    %v302 = vunpack.c.h.b16 %v118
    %v303 = vunpack.c.l.b16 %v119
    %v304 = vunpack.c.h.b16 %v119
    %v305 = vunpack.c.l.b16 %v120
    %v306 = vunpack.c.h.b16 %v120
    %v307 = vunpack.c.l.b16 %v121
    %v308 = vunpack.c.h.b16 %v121
    %v309 = vunpack.c.l.b16 %v122
    %v310 = vunpack.c.h.b16 %v122
    %v311 = vunpack.c.l.b16 %v123
    %v312 = vunpack.c.h.b16 %v123
    %v313 = vunpack.c.l.b16 %v124
    %v314 = vunpack.c.h.b16 %v124
    %v315 = vunpack.c.l.b16 %v125
    %v316 = vunpack.c.h.b16 %v125
    %v317 = vunpack.c.l.b16 %v126
    %v318 = vunpack.c.h.b16 %v126
    %v319 = vunpack.c.l.b16 %v127
    %v320 = vunpack.c.h.b16 %v127
    %v321 = vunpack.c.l.b16 %v128
    %v322 = vunpack.c.h.b16 %v128
    %v323 = vunpack.c.l.b16 %v129
    %v324 = vunpack.c.h.b16 %v129
    %v325 = vunpack.c.l.b16 %v130
    %v326 = vunpack.c.h.b16 %v130
    %v327 = vunpack.c.l.b16 %v131
    %v328 = vunpack.c.h.b16 %v131
    %v329 = vunpack.c.l.b16 %v132
    %v330 = vunpack.c.h.b16 %v132
    %v331 = vunpack.c.l.b16 %v133
    %v332 = vunpack.c.h.b16 %v133
    %v333 = vunpack.c.l.b16 %v134
    %v334 = vunpack.c.h.b16 %v134
    %v335 = vunpack.c.l.b16 %v135
    %v336 = vunpack.c.h.b16 %v135
    %v337 = vunpack.c.l.b16 %v136
    %v338 = vunpack.c.h.b16 %v136
    %v339 = vunpack.c.l.b16 %v137
    %v340 = vunpack.c.h.b16 %v137
    %v341 = vunpack.c.l.b16 %v138
    %v342 = vunpack.c.h.b16 %v138
    %v343 = vpack.c.b16 %v217, %v215
    %v344 = vpack.c.b16 %v218, %v216
    %v345 = vpack.c.b16 %v221, %v219
    %v346 = vpack.c.b16 %v222, %v220
    %v347 = vpack.c.b16 %v225, %v223
    %v348 = vpack.c.b16 %v226, %v224
    %v349 = vpack.c.b16 %v229, %v227
    %v350 = vpack.c.b16 %v230, %v228
    %v351 = vpack.c.b16 %v233, %v231
    %v352 = vpack.c.b16 %v234, %v232
    %v353 = vpack.c.b16 %v237, %v235
    %v354 = vpack.c.b16 %v238, %v236
    %v355 = vpack.c.b16 %v241, %v239
    %v356 = vpack.c.b16 %v242, %v240
    %v357 = vpack.c.b16 %v245, %v243
    %v358 = vpack.c.b16 %v246, %v244
    %v359 = vpack.c.b16 %v249, %v247
    %v360 = vpack.c.b16 %v250, %v248
    %v361 = vpack.c.b16 %v253, %v251
    %v362 = vpack.c.b16 %v254, %v252
    %v363 = vpack.c.b16 %v257, %v255
    %v364 = vpack.c.b16 %v258, %v256
    %v365 = vpack.c.b16 %v261, %v259
    %v366 = vpack.c.b16 %v262, %v260
    %v367 = vpack.c.b16 %v265, %v263
    %v368 = vpack.c.b16 %v266, %v264
    %v369 = vpack.c.b16 %v269, %v267
    %v370 = vpack.c.b16 %v270, %v268
    %v371 = vpack.c.b16 %v273, %v271
    %v372 = vpack.c.b16 %v274, %v272
    %v373 = vpack.c.b16 %v277, %v275
    %v374 = vpack.c.b16 %v278, %v276
    %v375 = vpack.c.b16 %v281, %v279
    %v376 = vpack.c.b16 %v282, %v280
    %v377 = vpack.c.b16 %v285, %v283
    %v378 = vpack.c.b16 %v286, %v284
    %v379 = vpack.c.b16 %v289, %v287
    %v380 = vpack.c.b16 %v290, %v288
    %v381 = vpack.c.b16 %v293, %v291
    %v382 = vpack.c.b16 %v294, %v292
    %v383 = vpack.c.b16 %v297, %v295
    %v384 = vpack.c.b16 %v298, %v296
    %v385 = vpack.c.b16 %v301, %v299
    %v386 = vpack.c.b16 %v302, %v300
    %v387 = vpack.c.b16 %v305, %v303
    %v388 = vpack.c.b16 %v306, %v304
    %v389 = vpack.c.b16 %v309, %v307
    %v390 = vpack.c.b16 %v310, %v308
    %v391 = vpack.c.b16 %v313, %v311
    %v392 = vpack.c.b16 %v314, %v312
    %v393 = vpack.c.b16 %v317, %v315
    %v394 = vpack.c.b16 %v318, %v316
    %v395 = vpack.c.b16 %v321, %v319
    %v396 = vpack.c.b16 %v322, %v320
    %v397 = vpack.c.b16 %v325, %v323
    %v398 = vpack.c.b16 %v326, %v324
    %v399 = vpack.c.b16 %v329, %v327
    %v400 = vpack.c.b16 %v330, %v328
    %v401 = vpack.c.b16 %v333, %v331
    %v402 = vpack.c.b16 %v334, %v332
    %v403 = vpack.c.b16 %v337, %v335
    %v404 = vpack.c.b16 %v338, %v336
    %v405 = vpack.c.b16 %v341, %v339
    %v406 = vpack.c.b16 %v342, %v340
    %471 = vmatprep.subr.bf16.mxu0 %v344
    %472 = vmatpush1.bf16.msra.mxu0 %v343
    %473 = vmatprep.subr.bf16.mxu0 %v346
    %474 = vmatpush1.bf16.msra.mxu0 %v345
    %475 = vmatprep.subr.bf16.mxu0 %v348
    %476 = vmatpush1.bf16.msra.mxu0 %v347
    %477 = vmatprep.subr.bf16.mxu0 %v350
    %478 = vmatpush1.bf16.msra.mxu0 %v349
    %479 = vmatprep.subr.bf16.mxu0 %v352
    %480 = vmatpush1.bf16.msra.mxu0 %v351
    %481 = vmatprep.subr.bf16.mxu0 %v354
    %482 = vmatpush1.bf16.msra.mxu0 %v353
    %483 = vmatprep.subr.bf16.mxu0 %v356
    %484 = vmatpush1.bf16.msra.mxu0 %v355
    %485 = vmatprep.subr.bf16.mxu0 %v358
    %486 = vmatpush1.bf16.msra.mxu0 %v357
    %487 = vmatprep.subr.bf16.mxu0 %v360
    %488 = vmatpush1.bf16.msra.mxu0 %v359
    %489 = vmatprep.subr.bf16.mxu0 %v362
    %490 = vmatpush1.bf16.msra.mxu0 %v361
    %491 = vmatprep.subr.bf16.mxu0 %v364
    %492 = vmatpush1.bf16.msra.mxu0 %v363
    %493 = vmatprep.subr.bf16.mxu0 %v366
    %494 = vmatpush1.bf16.msra.mxu0 %v365
    %495 = vmatprep.subr.bf16.mxu0 %v368
    %496 = vmatpush1.bf16.msra.mxu0 %v367
    %497 = vmatprep.subr.bf16.mxu0 %v370
    %498 = vmatpush1.bf16.msra.mxu0 %v369
    %499 = vmatprep.subr.bf16.mxu0 %v372
    %500 = vmatpush1.bf16.msra.mxu0 %v371
    %501 = vmatprep.subr.bf16.mxu0 %v374
    %502 = vmatpush1.bf16.msra.mxu0 %v373
    %503 = vmatprep.mubr.bf16.mxu0 %v72
    %504 = vmatmul.mubr.bf16.gmra.mrb[0].mxu0 %v71
    %v505 = vpop.f32.mrb[0].mxu0
    %v506 = vadd.f32 %v144, %v505
    %v507 = vpop.f32.mrb[0].mxu0
    %v508 = vadd.f32 %v148, %v507
    %v509 = vpop.f32.mrb[0].mxu0
    %v510 = vpop.f32.mrb[0].mxu0
    %511 = vdwg.mxu0
    %512 = vmatprep.subr.bf16.mxu0 %v376
    %513 = vmatpush1.bf16.msra.mxu0 %v375
    %514 = vmatprep.subr.bf16.mxu0 %v378
    %515 = vmatpush1.bf16.msra.mxu0 %v377
    %516 = vmatprep.subr.bf16.mxu0 %v380
    %517 = vmatpush1.bf16.msra.mxu0 %v379
    %518 = vmatprep.subr.bf16.mxu0 %v382
    %519 = vmatpush1.bf16.msra.mxu0 %v381
    %520 = vmatprep.subr.bf16.mxu0 %v384
    %521 = vmatpush1.bf16.msra.mxu0 %v383
    %522 = vmatprep.subr.bf16.mxu0 %v386
    %523 = vmatpush1.bf16.msra.mxu0 %v385
    %524 = vmatprep.subr.bf16.mxu0 %v388
    %525 = vmatpush1.bf16.msra.mxu0 %v387
    %526 = vmatprep.subr.bf16.mxu0 %v390
    %527 = vmatpush1.bf16.msra.mxu0 %v389
    %528 = vmatprep.subr.bf16.mxu0 %v392
    %529 = vmatpush1.bf16.msra.mxu0 %v391
    %530 = vmatprep.subr.bf16.mxu0 %v394
    %531 = vmatpush1.bf16.msra.mxu0 %v393
    %532 = vmatprep.subr.bf16.mxu0 %v396
    %533 = vmatpush1.bf16.msra.mxu0 %v395
    %534 = vmatprep.subr.bf16.mxu0 %v398
    %535 = vmatpush1.bf16.msra.mxu0 %v397
    %536 = vmatprep.subr.bf16.mxu0 %v400
    %537 = vmatpush1.bf16.msra.mxu0 %v399
    %538 = vmatprep.subr.bf16.mxu0 %v402
    %539 = vmatpush1.bf16.msra.mxu0 %v401
    %540 = vmatprep.subr.bf16.mxu0 %v404
    %541 = vmatpush1.bf16.msra.mxu0 %v403
    %542 = vmatprep.subr.bf16.mxu0 %v406
    %543 = vmatpush1.bf16.msra.mxu0 %v405
    %544 = vmatprep.mubr.bf16.mxu0 %v74
    %545 = vmatmul.mubr.bf16.gmra.mrb[0].mxu0 %v73
    %v546 = vpop.f32.mrb[0].mxu0
    %v547 = vadd.f32 %v506, %v546
    %v548 = vpop.f32.mrb[0].mxu0
    %v549 = vadd.f32 %v508, %v548
    %v550 = vpop.f32.mrb[0].mxu0
    %v551 = vpop.f32.mrb[0].mxu0
    %552 = vdwg.mxu0
    %v553 = vmax.f32 %v547, 0.0
    %v554 = vmax.f32 %v549, 0.0
    %v555 = vpack.c.bf16 %v553, %v553
    %v556 = vpack.c.bf16 %v554, %v554
    %v557 = vld [vmem:[#allocation7] sm:$0xff]
    %v558 = vld [vmem:[#allocation7 + $0x8] sm:$0xff]
    %v559 = vld [vmem:[#allocation7 + $0x10] sm:$0xff]
    %v560 = vld [vmem:[#allocation7 + $0x18] sm:$0xff]
    %v561 = vld [vmem:[#allocation7 + $0x20] sm:$0xff]
    %v562 = vld [vmem:[#allocation7 + $0x28] sm:$0xff]
    %v563 = vld [vmem:[#allocation7 + $0x30] sm:$0xff]
    %v564 = vld [vmem:[#allocation7 + $0x38] sm:$0xff]
    %v565 = vld [vmem:[#allocation7 + $0x40] sm:$0xff]
    %v566 = vld [vmem:[#allocation7 + $0x48] sm:$0xff]
    %v567 = vld [vmem:[#allocation7 + $0x50] sm:$0xff]
    %v568 = vld [vmem:[#allocation7 + $0x58] sm:$0xff]
    %v569 = vld [vmem:[#allocation7 + $0x60] sm:$0xff]
    %v570 = vld [vmem:[#allocation7 + $0x68] sm:$0xff]
    %v571 = vld [vmem:[#allocation7 + $0x70] sm:$0xff]
    %v572 = vld [vmem:[#allocation7 + $0x78] sm:$0xff]
    %v573 = vld [vmem:[#allocation7 + $0x80] sm:$0xff]
    %v574 = vld [vmem:[#allocation7 + $0x88] sm:$0xff]
    %v575 = vld [vmem:[#allocation7 + $0x90] sm:$0xff]
    %v576 = vld [vmem:[#allocation7 + $0x98] sm:$0xff]
    %v577 = vld [vmem:[#allocation7 + $0xa0] sm:$0xff]
    %v578 = vld [vmem:[#allocation7 + $0xa8] sm:$0xff]
    %v579 = vld [vmem:[#allocation7 + $0xb0] sm:$0xff]
    %v580 = vld [vmem:[#allocation7 + $0xb8] sm:$0xff]
    %v581 = vld [vmem:[#allocation7 + $0xc0] sm:$0xff]
    %v582 = vld [vmem:[#allocation7 + $0xc8] sm:$0xff]
    %v583 = vld [vmem:[#allocation7 + $0xd0] sm:$0xff]
    %v584 = vld [vmem:[#allocation7 + $0xd8] sm:$0xff]
    %v585 = vld [vmem:[#allocation7 + $0xe0] sm:$0xff]
    %v586 = vld [vmem:[#allocation7 + $0xe8] sm:$0xff]
    %v587 = vld [vmem:[#allocation7 + $0xf0] sm:$0xff]
    %v588 = vld [vmem:[#allocation7 + $0xf8] sm:$0xff]
    %v589 = vld [vmem:[%s4] sm:$0x3]
    %v591 = vlaneseq
    %v592 = vshrl.u32 %v591, 7
    %v593 = vsub.s32 0, %v592
    %v594 = vrot.slane %v589, %v593
    %v595 = vlaneseq
    %v596 = vshrl.u32 %v595, 7
    %v597 = vsub.s32 1, %v596
    %v598 = vrot.slane %v589, %v597
    %v633 = vunpack.c.l.b16 %v557
    %v634 = vunpack.c.h.b16 %v557
    %v635 = vunpack.c.l.b16 %v558
    %v636 = vunpack.c.h.b16 %v558
    %v637 = vunpack.c.l.b16 %v559
    %v638 = vunpack.c.h.b16 %v559
    %v639 = vunpack.c.l.b16 %v560
    %v640 = vunpack.c.h.b16 %v560
    %v641 = vunpack.c.l.b16 %v561
    %v642 = vunpack.c.h.b16 %v561
    %v643 = vunpack.c.l.b16 %v562
    %v644 = vunpack.c.h.b16 %v562
    %v645 = vunpack.c.l.b16 %v563
    %v646 = vunpack.c.h.b16 %v563
    %v647 = vunpack.c.l.b16 %v564
    %v648 = vunpack.c.h.b16 %v564
    %v649 = vunpack.c.l.b16 %v565
    %v650 = vunpack.c.h.b16 %v565
    %v651 = vunpack.c.l.b16 %v566
    %v652 = vunpack.c.h.b16 %v566
    %v653 = vunpack.c.l.b16 %v567
    %v654 = vunpack.c.h.b16 %v567
    %v655 = vunpack.c.l.b16 %v568
    %v656 = vunpack.c.h.b16 %v568
    %v657 = vunpack.c.l.b16 %v569
    %v658 = vunpack.c.h.b16 %v569
    %v659 = vunpack.c.l.b16 %v570
    %v660 = vunpack.c.h.b16 %v570
    %v661 = vunpack.c.l.b16 %v571
    %v662 = vunpack.c.h.b16 %v571
    %v663 = vunpack.c.l.b16 %v572
    %v664 = vunpack.c.h.b16 %v572
    %v665 = vunpack.c.l.b16 %v573
    %v666 = vunpack.c.h.b16 %v573
    %v667 = vunpack.c.l.b16 %v574
    %v668 = vunpack.c.h.b16 %v574
    %v669 = vunpack.c.l.b16 %v575
    %v670 = vunpack.c.h.b16 %v575
    %v671 = vunpack.c.l.b16 %v576
    %v672 = vunpack.c.h.b16 %v576
    %v673 = vunpack.c.l.b16 %v577
    %v674 = vunpack.c.h.b16 %v577
    %v675 = vunpack.c.l.b16 %v578
    %v676 = vunpack.c.h.b16 %v578
    %v677 = vunpack.c.l.b16 %v579
    %v678 = vunpack.c.h.b16 %v579
    %v679 = vunpack.c.l.b16 %v580
    %v680 = vunpack.c.h.b16 %v580
    %v681 = vunpack.c.l.b16 %v581
    %v682 = vunpack.c.h.b16 %v581
    %v683 = vunpack.c.l.b16 %v582
    %v684 = vunpack.c.h.b16 %v582
    %v685 = vunpack.c.l.b16 %v583
    %v686 = vunpack.c.h.b16 %v583
    %v687 = vunpack.c.l.b16 %v584
    %v688 = vunpack.c.h.b16 %v584
    %v689 = vunpack.c.l.b16 %v585
    %v690 = vunpack.c.h.b16 %v585
    %v691 = vunpack.c.l.b16 %v586
    %v692 = vunpack.c.h.b16 %v586
    %v693 = vunpack.c.l.b16 %v587
    %v694 = vunpack.c.h.b16 %v587
    %v695 = vunpack.c.l.b16 %v588
    %v696 = vunpack.c.h.b16 %v588
    %v697 = vpack.c.b16 %v635, %v633
    %v698 = vpack.c.b16 %v636, %v634
    %v699 = vpack.c.b16 %v639, %v637
    %v700 = vpack.c.b16 %v640, %v638
    %v701 = vpack.c.b16 %v643, %v641
    %v702 = vpack.c.b16 %v644, %v642
    %v703 = vpack.c.b16 %v647, %v645
    %v704 = vpack.c.b16 %v648, %v646
    %v705 = vpack.c.b16 %v651, %v649
    %v706 = vpack.c.b16 %v652, %v650
    %v707 = vpack.c.b16 %v655, %v653
    %v708 = vpack.c.b16 %v656, %v654
    %v709 = vpack.c.b16 %v659, %v657
    %v710 = vpack.c.b16 %v660, %v658
    %v711 = vpack.c.b16 %v663, %v661
    %v712 = vpack.c.b16 %v664, %v662
    %v713 = vpack.c.b16 %v667, %v665
    %v714 = vpack.c.b16 %v668, %v666
    %v715 = vpack.c.b16 %v671, %v669
    %v716 = vpack.c.b16 %v672, %v670
    %v717 = vpack.c.b16 %v675, %v673
    %v718 = vpack.c.b16 %v676, %v674
    %v719 = vpack.c.b16 %v679, %v677
    %v720 = vpack.c.b16 %v680, %v678
    %v721 = vpack.c.b16 %v683, %v681
    %v722 = vpack.c.b16 %v684, %v682
    %v723 = vpack.c.b16 %v687, %v685
    %v724 = vpack.c.b16 %v688, %v686
    %v725 = vpack.c.b16 %v691, %v689
    %v726 = vpack.c.b16 %v692, %v690
    %v727 = vpack.c.b16 %v695, %v693
    %v728 = vpack.c.b16 %v696, %v694
    %761 = vmatprep.subr.bf16.mxu0 %v698
    %762 = vmatpush1.bf16.msra.mxu0 %v697
    %763 = vmatprep.subr.bf16.mxu0 %v700
    %764 = vmatpush1.bf16.msra.mxu0 %v699
    %765 = vmatprep.subr.bf16.mxu0 %v702
    %766 = vmatpush1.bf16.msra.mxu0 %v701
    %767 = vmatprep.subr.bf16.mxu0 %v704
    %768 = vmatpush1.bf16.msra.mxu0 %v703
    %769 = vmatprep.subr.bf16.mxu0 %v706
    %770 = vmatpush1.bf16.msra.mxu0 %v705
    %771 = vmatprep.subr.bf16.mxu0 %v708
    %772 = vmatpush1.bf16.msra.mxu0 %v707
    %773 = vmatprep.subr.bf16.mxu0 %v710
    %774 = vmatpush1.bf16.msra.mxu0 %v709
    %775 = vmatprep.subr.bf16.mxu0 %v712
    %776 = vmatpush1.bf16.msra.mxu0 %v711
    %777 = vmatprep.subr.bf16.mxu0 %v714
    %778 = vmatpush1.bf16.msra.mxu0 %v713
    %779 = vmatprep.subr.bf16.mxu0 %v716
    %780 = vmatpush1.bf16.msra.mxu0 %v715
    %781 = vmatprep.subr.bf16.mxu0 %v718
    %782 = vmatpush1.bf16.msra.mxu0 %v717
    %783 = vmatprep.subr.bf16.mxu0 %v720
    %784 = vmatpush1.bf16.msra.mxu0 %v719
    %785 = vmatprep.subr.bf16.mxu0 %v722
    %786 = vmatpush1.bf16.msra.mxu0 %v721
    %787 = vmatprep.subr.bf16.mxu0 %v724
    %788 = vmatpush1.bf16.msra.mxu0 %v723
    %789 = vmatprep.subr.bf16.mxu0 %v726
    %790 = vmatpush1.bf16.msra.mxu0 %v725
    %791 = vmatprep.subr.bf16.mxu0 %v728
    %792 = vmatpush1.bf16.msra.mxu0 %v727
    %793 = vmatprep.mubr.bf16.mxu0 %v556
    %794 = vmatmul.mubr.bf16.gmra.mrb[0].mxu0 %v555
    %v795 = vpop.f32.mrb[0].mxu0
    %v796 = vadd.f32 %v594, %v795
    %v797 = vpop.f32.mrb[0].mxu0
    %v798 = vadd.f32 %v598, %v797
    %v799 = vpop.f32.mrb[0].mxu0
    %v800 = vpop.f32.mrb[0].mxu0
    %801 = vdwg.mxu0
    %v802 = vmax.f32 %v796, 0.0
    %v803 = vmax.f32 %v798, 0.0
    %v804 = vpack.c.bf16 %v802, %v802
    %v805 = vpack.c.bf16 %v803, %v803
    %v806 = vld [vmem:[%s5] sm:$0xff]
    %v807 = vld [vmem:[%s6] sm:$0xff]
    %809 = vset.pattern.permute.xlu0 0
    %810 = vperm.xlu0 %809, %v807
    %v811 = vpop.permute.xlu0 %810
    %v814 = vunpack.c.l.b16 %v806
    %v815 = vunpack.c.h.b16 %v806
    %v816 = vpack.c.b16 %v814, %v814
    %v817 = vpack.c.b16 %v815, %v815
    %820 = vmatprep.subr.bf16.mxu0 %v805
    %821 = vmatpush1.bf16.xpose.msra.mxu0 %v804
    %822 = vmatprep.subr.bf16.mxu0 0
    %823 = vmatpush1.bf16.xpose.msra.mxu0 0
    %824 = vmatprep.subr.bf16.mxu0 0
    %825 = vmatpush1.bf16.xpose.msra.mxu0 0
    %826 = vmatprep.subr.bf16.mxu0 0
    %827 = vmatpush1.bf16.xpose.msra.mxu0 0
    %828 = vmatprep.subr.bf16.mxu0 0
    %829 = vmatpush1.bf16.xpose.msra.mxu0 0
    %830 = vmatprep.subr.bf16.mxu0 0
    %831 = vmatpush1.bf16.xpose.msra.mxu0 0
    %832 = vmatprep.subr.bf16.mxu0 0
    %833 = vmatpush1.bf16.xpose.msra.mxu0 0
    %834 = vmatprep.subr.bf16.mxu0 0
    %835 = vmatpush1.bf16.xpose.msra.mxu0 0
    %836 = vmatprep.subr.bf16.mxu0 0
    %837 = vmatpush1.bf16.xpose.msra.mxu0 0
    %838 = vmatprep.subr.bf16.mxu0 0
    %839 = vmatpush1.bf16.xpose.msra.mxu0 0
    %840 = vmatprep.subr.bf16.mxu0 0
    %841 = vmatpush1.bf16.xpose.msra.mxu0 0
    %842 = vmatprep.subr.bf16.mxu0 0
    %843 = vmatpush1.bf16.xpose.msra.mxu0 0
    %844 = vmatprep.subr.bf16.mxu0 0
    %845 = vmatpush1.bf16.xpose.msra.mxu0 0
    %846 = vmatprep.subr.bf16.mxu0 0
    %847 = vmatpush1.bf16.xpose.msra.mxu0 0
    %848 = vmatprep.subr.bf16.mxu0 0
    %849 = vmatpush1.bf16.xpose.msra.mxu0 0
    %850 = vmatprep.subr.bf16.mxu0 0
    %851 = vmatpush1.bf16.xpose.msra.mxu0 0
    %852 = vmatprep.mubr.bf16.mxu0 %v817
    %853 = vmatmul.mubr.bf16.gmra.mrb[0].mxu0 %v816
    %v854 = vpop.f32.mrb[0].mxu0
    %v855 = vadd.f32 %v811, %v854
    %v856 = vpop.f32.mrb[0].mxu0
    %v857 = vpop.f32.mrb[0].mxu0
    %v858 = vpop.f32.mrb[0].mxu0
    %859 = vdwg.mxu0
    %vm860 = vcmask 64512
    %861 = vst.msk [vmem:[#allocation8] sm:$0xff] %vm860, %v855
    // Predicated region
    $region42: #{tpu_custom_call.1} parent=1 // pred_check
      _
    $region43: #{tpu_custom_call.1} parent=1 // pred_check_branch
      %863 = sbr.rel (0) target = $region45
    $region44: #{tpu_custom_call.1} parent=1 // pred_region
      %s865 = ssub.s32 128, 128
      %866 = vsyncadd [#allocation4], %s865
      %s868 = sshll.u32 [#allocation8], 4
      %s869 = int_to_ptr.vmem [resolvable:$true] %s868
      %871 = dma.vmem_to_hbm [thread:$0]  %s869, 128, %s7, [#allocation4]
    $region45: #{tpu_custom_call.1} parent=1 // pred_fallthru
      _
    // Predicated region
    $region46: #{tpu_custom_call.1} parent=1 // pred_check
      _
    $region47: #{tpu_custom_call.1} parent=1 // pred_check_branch
      %873 = sbr.rel (0) target = $region49
    $region48: #{tpu_custom_call.1} parent=1 // pred_region
      %874 = dma.done [#allocation4], 128
    $region49: #{tpu_custom_call.1} parent=1 // pred_fallthru
      _
    %875 = vsyncpa [#allocation3], 1
    %876 = vsyncpa [#allocation6], 1
    %877 = vsyncpa [#allocation4], 1

</llo_original>
